<compile_context>
chip_gen: v7x
topology: tpu7x:2x2x1
jax: 0.10.0
libtpu: 0.0.40
codegen_flags: <defaults>
</compile_context>

<pallas_src>
import functools

import jax
import jax.numpy as jnp
from jax.experimental import pallas as pl
from jax.experimental.pallas import tpu as pltpu

_LANE = 128     # lane width  (last dim granularity)
_SUBLANE = 8    # sublane width (second-to-last dim granularity)


def _round_up(x: int, m: int) -> int:
    return (x + m - 1) // m * m


def _reverse_func_kernel(t_ref, y_ref, w1_ref, b1_ref, w2_ref, b2_ref, o_ref,
                         *, mxu_dtype):
    # _ReverseFunc: out = -base_func(-t, y)
    # with base_func(t, y) = tanh(y @ W1 + t * b1) @ W2 + b2.
    neg_t = -t_ref[0, 0]                     # scalar time from SMEM, negated

    # First matmul on the MXU.  Operands cast to `mxu_dtype` (bf16 on v6e/v7x)
    # at the dot inputs; accumulation is f32.
    h = jnp.dot(y_ref[...].astype(mxu_dtype),
                w1_ref[...].astype(mxu_dtype),
                preferred_element_type=jnp.float32)

    # Bias + tanh stay in f32 (VPU + EUP; v5e has no bf16 VALU/EUP).
    h = jnp.tanh(h + neg_t * b1_ref[...])    # b1 broadcast over batch rows

    # Fold the outer negation into the epilogue: -(h @ W2 + b2) = (-h) @ W2 - b2.
    out = jnp.dot((-h).astype(mxu_dtype),
                  w2_ref[...].astype(mxu_dtype),
                  preferred_element_type=jnp.float32) - b2_ref[...]

    # Lane-dense store (padded last dim is a multiple of 128 -> plain vst).
    o_ref[...] = out.astype(o_ref.dtype)


def reverse_func(t, y, w1, b1, w2, b2, *, block_b=256, mxu_dtype=jnp.bfloat16):
    """Computes -base_func(-t, y) with base_func = tanh(y@W1 + t*b1)@W2 + b2."""
    batch, dim = y.shape
    hidden = w1.shape[1]
    f32 = jnp.float32

    # Pad feature dims to the 128-lane grain and the batch to the tile grain.
    d_pad = _round_up(dim, _LANE)
    h_pad = _round_up(hidden, _LANE)
    b_tile = min(block_b, _round_up(batch, _SUBLANE))
    b_pad = _round_up(batch, b_tile)

    y_p = jnp.zeros((b_pad, d_pad), f32).at[:batch, :dim].set(y.astype(f32))
    w1_p = jnp.zeros((d_pad, h_pad), f32).at[:dim, :hidden].set(w1.astype(f32))
    b1_p = jnp.zeros((1, h_pad), f32).at[:, :hidden].set(b1.astype(f32).reshape(1, hidden))
    w2_p = jnp.zeros((h_pad, d_pad), f32).at[:hidden, :dim].set(w2.astype(f32))
    b2_p = jnp.zeros((1, d_pad), f32).at[:, :dim].set(b2.astype(f32).reshape(1, dim))
    t2d = jnp.reshape(t, (1, 1)).astype(f32)

    grid = (b_pad // b_tile,)
    kernel = functools.partial(_reverse_func_kernel, mxu_dtype=mxu_dtype)

    bytes_accessed = int(
        (y_p.size + b_pad * d_pad + w1_p.size + w2_p.size + b1_p.size + b2_p.size) * 4)
    cost = pl.CostEstimate(
        flops=int(2 * b_pad * (d_pad * h_pad + h_pad * d_pad)),
        transcendentals=int(b_pad * h_pad),
        bytes_accessed=bytes_accessed,
    )

    out_p = pl.pallas_call(
        kernel,
        out_shape=jax.ShapeDtypeStruct((b_pad, d_pad), y.dtype),
        grid=grid,
        in_specs=[
            pl.BlockSpec(memory_space=pltpu.MemorySpace.SMEM),   # t (scalar, SMEM)
            pl.BlockSpec((b_tile, d_pad), lambda i: (i, 0)),     # y: tiled over batch
            pl.BlockSpec((d_pad, h_pad), lambda i: (0, 0)),      # W1: resident
            pl.BlockSpec((1, h_pad), lambda i: (0, 0)),          # b1: resident
            pl.BlockSpec((h_pad, d_pad), lambda i: (0, 0)),      # W2: resident
            pl.BlockSpec((1, d_pad), lambda i: (0, 0)),          # b2: resident
        ],
        out_specs=pl.BlockSpec((b_tile, d_pad), lambda i: (i, 0)),
        compiler_params=pltpu.CompilerParams(
            dimension_semantics=("parallel",),
        ),
        cost_estimate=cost,
    )(t2d, y_p, w1_p, b1_p, w2_p, b2_p)

    # Slice the zero-padding off.
    return out_p[:batch, :dim]


def reverse_func_ref(t, y, w1, b1, w2, b2):
    """Pure-JAX (f32) reference of -base_func(-t, y)."""
    neg_t = -t
    h = jnp.tanh(y @ w1 + neg_t * b1)
    return -(h @ w2 + b2)


if __name__ == "__main__":
    batch, dim, hidden = 8, 32, 128

    key = jax.random.PRNGKey(0)
    k_y, k_w1, k_b1, k_w2, k_b2 = jax.random.split(key, 5)

    # Inputs (t is the ODE time scalar, y is the state [batch, dim]).
    y = jax.random.normal(k_y, (batch, dim), dtype=jnp.float32)
    t = jnp.float32(0.37)

    # Deterministic synthetic base_func parameters.
    w1 = jax.random.normal(k_w1, (dim, hidden), dtype=jnp.float32) * 0.1
    b1 = jax.random.normal(k_b1, (hidden,), dtype=jnp.float32) * 0.1
    w2 = jax.random.normal(k_w2, (hidden, dim), dtype=jnp.float32) * 0.1
    b2 = jax.random.normal(k_b2, (dim,), dtype=jnp.float32) * 0.1

    ref = reverse_func_ref(t, y, w1, b1, w2, b2)

    # Full-precision MXU path (tight check).
    out_f32 = jax.block_until_ready(
        reverse_func(t, y, w1, b1, w2, b2, mxu_dtype=jnp.float32))
    assert out_f32.shape == (batch, dim), out_f32.shape
    assert jnp.allclose(out_f32, ref, atol=1e-4, rtol=1e-4), \
        float(jnp.max(jnp.abs(out_f32 - ref)))

    # bf16-operand MXU path (v6e/v7x fast path): bf16 dot inputs, f32 accumulation,
    # f32 elementwise -> looser tolerance vs. the f32 reference.
    out_bf16 = jax.block_until_ready(
        reverse_func(t, y, w1, b1, w2, b2, mxu_dtype=jnp.bfloat16))
    assert out_bf16.shape == (batch, dim), out_bf16.shape
    assert jnp.allclose(out_bf16, ref, atol=3e-2, rtol=3e-2), \
        float(jnp.max(jnp.abs(out_bf16 - ref)))

    print("KERNEL_OK")
</pallas_src>

<mosaic_0001>
module attributes {stable_mosaic.version = 11 : i64} {
  func.func @_reverse_func_kernel(%arg0: i32, %arg1: memref<1x1xf32, #tpu.memory_space<smem>>, %arg2: memref<8x128xf32, #tpu.memory_space<vmem>>, %arg3: memref<128x128xf32, #tpu.memory_space<vmem>>, %arg4: memref<1x128xf32, #tpu.memory_space<vmem>>, %arg5: memref<128x128xf32, #tpu.memory_space<vmem>>, %arg6: memref<1x128xf32, #tpu.memory_space<vmem>>, %arg7: memref<8x128xf32, #tpu.memory_space<vmem>>) attributes {dimension_semantics = [#tpu.dimension_semantics<parallel>], iteration_bounds = array<i64: 1>, scalar_prefetch = 0 : i64, scratch_operands = 0 : i64, tpu.core_type = #tpu.core_type<tc>, window_params = [{transform_indices = @transform_0, window_bounds = array<i64: 1, 1>}, {transform_indices = @transform_1, window_bounds = array<i64: 8, 128>}, {pipeline_mode = #tpu.pipeline_mode<synchronous>, transform_indices = @transform_2, window_bounds = array<i64: 128, 128>}, {pipeline_mode = #tpu.pipeline_mode<synchronous>, transform_indices = @transform_3, window_bounds = array<i64: 1, 128>}, {pipeline_mode = #tpu.pipeline_mode<synchronous>, transform_indices = @transform_4, window_bounds = array<i64: 128, 128>}, {pipeline_mode = #tpu.pipeline_mode<synchronous>, transform_indices = @transform_5, window_bounds = array<i64: 1, 128>}, {transform_indices = @transform_6, window_bounds = array<i64: 8, 128>}]} {
    %c0 = arith.constant 0 : index
    %c0_0 = arith.constant 0 : index
    %0 = memref.load %arg1[%c0, %c0_0] : memref<1x1xf32, #tpu.memory_space<smem>>
    %cst = arith.constant 0.000000e+00 : f32
    %1 = arith.subf %cst, %0 : f32
    %c0_1 = arith.constant 0 : index
    %c0_2 = arith.constant 0 : index
    %2 = vector.load %arg2[%c0_1, %c0_2] : memref<8x128xf32, #tpu.memory_space<vmem>>, vector<8x128xf32>
    %c0_3 = arith.constant 0 : index
    %c0_4 = arith.constant 0 : index
    %3 = vector.load %arg3[%c0_3, %c0_4] : memref<128x128xf32, #tpu.memory_space<vmem>>, vector<128x128xf32>
    %cst_5 = arith.constant dense<0.000000e+00> : vector<8x128xf32>
    %4 = tpu.matmul %2, %3, %cst_5 {dimension_numbers = #tpu.dot_dimension_numbers<[1], [0], [0], [1], [0, 0, 1, 1], [], []>} : vector<8x128xf32>, vector<128x128xf32>, vector<8x128xf32> -> vector<8x128xf32>
    %c0_6 = arith.constant 0 : index
    %c0_7 = arith.constant 0 : index
    %5 = vector.load %arg4[%c0_6, %c0_7] : memref<1x128xf32, #tpu.memory_space<vmem>>, vector<1x128xf32>
    %6 = vector.broadcast %1 : f32 to vector<1x128xf32>
    %7 = arith.mulf %6, %5 : vector<1x128xf32>
    %8 = vector.broadcast %7 : vector<1x128xf32> to vector<8x128xf32>
    %9 = arith.addf %4, %8 : vector<8x128xf32>
    %10 = math.tanh %9 : vector<8x128xf32>
    %cst_8 = arith.constant 0.000000e+00 : f32
    %11 = vector.broadcast %cst_8 : f32 to vector<8x128xf32>
    %12 = arith.subf %11, %10 : vector<8x128xf32>
    %c0_9 = arith.constant 0 : index
    %c0_10 = arith.constant 0 : index
    %13 = vector.load %arg5[%c0_9, %c0_10] : memref<128x128xf32, #tpu.memory_space<vmem>>, vector<128x128xf32>
    %cst_11 = arith.constant dense<0.000000e+00> : vector<8x128xf32>
    %14 = tpu.matmul %12, %13, %cst_11 {dimension_numbers = #tpu.dot_dimension_numbers<[1], [0], [0], [1], [0, 0, 1, 1], [], []>} : vector<8x128xf32>, vector<128x128xf32>, vector<8x128xf32> -> vector<8x128xf32>
    %c0_12 = arith.constant 0 : index
    %c0_13 = arith.constant 0 : index
    %15 = vector.load %arg6[%c0_12, %c0_13] : memref<1x128xf32, #tpu.memory_space<vmem>>, vector<1x128xf32>
    %16 = vector.broadcast %15 : vector<1x128xf32> to vector<8x128xf32>
    %17 = arith.subf %14, %16 : vector<8x128xf32>
    %c0_14 = arith.constant 0 : index
    %c0_15 = arith.constant 0 : index
    %18 = vector.load %arg7[%c0_14, %c0_15] : memref<8x128xf32, #tpu.memory_space<vmem>>, vector<8x128xf32>
    tpu.vector_store %arg7[%c0_14, %c0_15], %17 {strides = array<i32>} : memref<8x128xf32, #tpu.memory_space<vmem>>, vector<8x128xf32>,
    return
  }
  func.func @transform_0(%arg0: i32) -> (i32, i32) {
    %c0_i32 = arith.constant 0 : i32
    %c0_i32_0 = arith.constant 0 : i32
    %c0_i32_1 = arith.constant 0 : i32
    return %c0_i32, %c0_i32_0 : i32, i32
  }
  func.func @transform_1(%arg0: i32) -> (i32, i32) {
    %c0_i32 = arith.constant 0 : i32
    %c0_i32_0 = arith.constant 0 : i32
    return %arg0, %c0_i32 : i32, i32
  }
  func.func @transform_2(%arg0: i32) -> (i32, i32) {
    %c0_i32 = arith.constant 0 : i32
    %c0_i32_0 = arith.constant 0 : i32
    %c0_i32_1 = arith.constant 0 : i32
    return %c0_i32, %c0_i32_0 : i32, i32
  }
  func.func @transform_3(%arg0: i32) -> (i32, i32) {
    %c0_i32 = arith.constant 0 : i32
    %c0_i32_0 = arith.constant 0 : i32
    %c0_i32_1 = arith.constant 0 : i32
    return %c0_i32, %c0_i32_0 : i32, i32
  }
  func.func @transform_4(%arg0: i32) -> (i32, i32) {
    %c0_i32 = arith.constant 0 : i32
    %c0_i32_0 = arith.constant 0 : i32
    %c0_i32_1 = arith.constant 0 : i32
    return %c0_i32, %c0_i32_0 : i32, i32
  }
  func.func @transform_5(%arg0: i32) -> (i32, i32) {
    %c0_i32 = arith.constant 0 : i32
    %c0_i32_0 = arith.constant 0 : i32
    %c0_i32_1 = arith.constant 0 : i32
    return %c0_i32, %c0_i32_0 : i32, i32
  }
  func.func @transform_6(%arg0: i32) -> (i32, i32) {
    %c0_i32 = arith.constant 0 : i32
    %c0_i32_0 = arith.constant 0 : i32
    return %arg0, %c0_i32 : i32, i32
  }
}

</mosaic_0001>

<llo_original>
// kernel: tpu_custom_call.1
$region0: #{tpu_custom_call.1}
  #allocation0 [shape = 'u32[]', space=smem, size = 0x4, offset = 0x4, fixed_abs, tag = 'smem constant byte address 0x4 - core index']
  #allocation1 [shape = 'u32[144,128]{1,0:T(1,128)}', space=vmem, size = 0x12000, scoped, tag = 'internal scratch']
  #allocation2 [shape = 'f32[1,1]{1,0:T(1,128)S(6)}', space=smem, size = 0x200, scoped, tag = 'scoped memory for tpu_custom_call.1']
  %s0 = inlined_call_operand.<no memory space> [shape: f32[1,1], index: 0, kind: input, shape index: {}]
  %s1 = inlined_call_operand.hbm [shape: f32[8,128], index: 1, kind: input, shape index: {}]
  %s2 = inlined_call_operand.hbm [shape: f32[128,128], index: 2, kind: input, shape index: {}]
  %s3 = inlined_call_operand.vmem [shape: f32[1,128], index: 3, kind: input, shape index: {}]
  %s4 = inlined_call_operand.hbm [shape: f32[128,128], index: 4, kind: input, shape index: {}]
  %s5 = inlined_call_operand.vmem [shape: f32[1,128], index: 5, kind: input, shape index: {}]
  %s6 = inlined_call_operand.hbm [shape: f32[8,128], index: 6, kind: output, shape index: {}]
  %s7 = sld [smem:[#allocation0]]
  $region46: #{tpu_custom_call.1} parent=0
    _
  %s9 = ssub.s32 1, %s7
  %s10 = scalar_select 0, %s9, %s7
  %11 = sst [smem:[#allocation2]] %s0
  $region1: #{tpu_custom_call.1} parent=0
    #allocation3 [shape = 'u8[4096]{0}', space=vmem, size = 0x1000, scoped, tag = 'input window, operand 1, single buffered']
    #allocation4 [shape = 's32[1]{0}', space=sflag, size = 0x4, scoped, tag = 'scoped memory for tpu_custom_call.1']
    #allocation5 [shape = 's32[1]{0}', space=sflag, size = 0x4, scoped, tag = 'scoped memory for tpu_custom_call.1']
    #allocation6 [shape = 'u8[65536]{0}', space=vmem, size = 0x10000, scoped, tag = 'input window, operand 2, single buffered']
    #allocation7 [shape = 's32[1]{0}', space=sflag, size = 0x4, scoped, tag = 'scoped memory for tpu_custom_call.1']
    #allocation8 [shape = 'u8[65536]{0}', space=vmem, size = 0x10000, scoped, tag = 'input window, operand 4, single buffered']
    #allocation9 [shape = 'u8[4096]{0}', space=vmem, size = 0x1000, scoped, tag = 'output window, operand 0, single buffered']
    %12 = vsyncpa [#allocation4], 0
    %13 = vsyncpa [#allocation7], 0
    %14 = vsyncpa [#allocation5], 0
    // Predicated region
    $region2: #{tpu_custom_call.1} parent=1 // pred_check
      _
    $region3: #{tpu_custom_call.1} parent=1 // pred_check_branch
      %16 = sbr.rel (0) target = $region5
    $region4: #{tpu_custom_call.1} parent=1 // pred_region
      _
    $region5: #{tpu_custom_call.1} parent=1 // pred_fallthru
      _
    // Predicated region
    $region6: #{tpu_custom_call.1} parent=1 // pred_check
      _
    $region7: #{tpu_custom_call.1} parent=1 // pred_check_branch
      %18 = sbr.rel (0) target = $region9
    $region8: #{tpu_custom_call.1} parent=1 // pred_region
      %s20 = ssub.s32 128, 128
      %21 = vsyncadd [#allocation4], %s20
      %s23 = sshll.u32 [#allocation3], 4
      %s24 = int_to_ptr.vmem [resolvable:$true] %s23
      %26 = dma.hbm_to_vmem [thread:$0]  %s1, 128, %s24, [#allocation4]
    $region9: #{tpu_custom_call.1} parent=1 // pred_fallthru
      _
    // Predicated region
    $region10: #{tpu_custom_call.1} parent=1 // pred_check
      _
    $region11: #{tpu_custom_call.1} parent=1 // pred_check_branch
      %28 = sbr.rel (0) target = $region13
    $region12: #{tpu_custom_call.1} parent=1 // pred_region
      %s30 = ssub.s32 2048, 2048
      %31 = vsyncadd [#allocation7], %s30
      %s32 = sshll.u32 [#allocation6], 4
      %s33 = int_to_ptr.vmem [resolvable:$true] %s32
      %38 = dma.hbm_to_vmem [thread:$0]  %s2, 2048, %s33, [#allocation7], 128, 128, 8
    $region13: #{tpu_custom_call.1} parent=1 // pred_fallthru
      _
    // Predicated region
    $region14: #{tpu_custom_call.1} parent=1 // pred_check
      _
    $region15: #{tpu_custom_call.1} parent=1 // pred_check_branch
      %40 = sbr.rel (0) target = $region17
    $region16: #{tpu_custom_call.1} parent=1 // pred_region
      _
    $region17: #{tpu_custom_call.1} parent=1 // pred_fallthru
      _
    // Predicated region
    $region18: #{tpu_custom_call.1} parent=1 // pred_check
      _
    $region19: #{tpu_custom_call.1} parent=1 // pred_check_branch
      %42 = sbr.rel (0) target = $region21
    $region20: #{tpu_custom_call.1} parent=1 // pred_region
      %s44 = ssub.s32 2048, 2048
      %45 = vsyncadd [#allocation7], %s44
      %s46 = sshll.u32 [#allocation8], 4
      %s47 = int_to_ptr.vmem [resolvable:$true] %s46
      %52 = dma.hbm_to_vmem [thread:$0]  %s4, 2048, %s47, [#allocation7], 128, 128, 8
    $region21: #{tpu_custom_call.1} parent=1 // pred_fallthru
      _
    // Predicated region
    $region22: #{tpu_custom_call.1} parent=1 // pred_check
      _
    $region23: #{tpu_custom_call.1} parent=1 // pred_check_branch
      %54 = sbr.rel (0) target = $region25
    $region24: #{tpu_custom_call.1} parent=1 // pred_region
      _
    $region25: #{tpu_custom_call.1} parent=1 // pred_fallthru
      _
    // Predicated region
    $region26: #{tpu_custom_call.1} parent=1 // pred_check
      _
    $region27: #{tpu_custom_call.1} parent=1 // pred_check_branch
      %56 = sbr.rel (0) target = $region29
    $region28: #{tpu_custom_call.1} parent=1 // pred_region
      %57 = dma.done [#allocation4], 128
    $region29: #{tpu_custom_call.1} parent=1 // pred_fallthru
      _
    // Predicated region
    $region30: #{tpu_custom_call.1} parent=1 // pred_check
      _
    $region31: #{tpu_custom_call.1} parent=1 // pred_check_branch
      %59 = sbr.rel (0) target = $region33
    $region32: #{tpu_custom_call.1} parent=1 // pred_region
      %60 = dma.done [#allocation7], 2048
    $region33: #{tpu_custom_call.1} parent=1 // pred_fallthru
      _
    // Predicated region
    $region34: #{tpu_custom_call.1} parent=1 // pred_check
      _
    $region35: #{tpu_custom_call.1} parent=1 // pred_check_branch
      %62 = sbr.rel (0) target = $region37
    $region36: #{tpu_custom_call.1} parent=1 // pred_region
      %63 = dma.done [#allocation7], 2048
    $region37: #{tpu_custom_call.1} parent=1 // pred_fallthru
      _
    %s64 = sld [smem:[#allocation2]]
    %s65 = ssub.f32 0.0, %s64
    %v66 = vld [vmem:[#allocation3] sm:$0xff]
    %v67 = vld [vmem:[#allocation6] sm:$0xff]
    %v68 = vld [vmem:[#allocation6 + $0x8] sm:$0xff]
    %v69 = vld [vmem:[#allocation6 + $0x10] sm:$0xff]
    %v70 = vld [vmem:[#allocation6 + $0x18] sm:$0xff]
    %v71 = vld [vmem:[#allocation6 + $0x20] sm:$0xff]
    %v72 = vld [vmem:[#allocation6 + $0x28] sm:$0xff]
    %v73 = vld [vmem:[#allocation6 + $0x30] sm:$0xff]
    %v74 = vld [vmem:[#allocation6 + $0x38] sm:$0xff]
    %v75 = vld [vmem:[#allocation6 + $0x40] sm:$0xff]
    %v76 = vld [vmem:[#allocation6 + $0x48] sm:$0xff]
    %v77 = vld [vmem:[#allocation6 + $0x50] sm:$0xff]
    %v78 = vld [vmem:[#allocation6 + $0x58] sm:$0xff]
    %v79 = vld [vmem:[#allocation6 + $0x60] sm:$0xff]
    %v80 = vld [vmem:[#allocation6 + $0x68] sm:$0xff]
    %v81 = vld [vmem:[#allocation6 + $0x70] sm:$0xff]
    %v82 = vld [vmem:[#allocation6 + $0x78] sm:$0xff]
    %v83 = vld [vmem:[%s3] sm:$0x1]
    %v84 = vstv %s65
    %v85 = vmul.f32 %v84, %v83
    %v87 = vlaneseq
    %v88 = vshrl.u32 %v87, 7
    %v89 = vsub.s32 0, %v88
    %v90 = vrot.slane %v85, %v89
    %92 = vmatprep.subr.mxu0 0.0
    %93 = vmatpush1.msra.mxu0 %v67
    %94 = vmatprep.subr.mxu0 0.0
    %95 = vmatpush1.msra.mxu0 %v68
    %96 = vmatprep.subr.mxu0 0.0
    %97 = vmatpush1.msra.mxu0 %v69
    %98 = vmatprep.subr.mxu0 0.0
    %99 = vmatpush1.msra.mxu0 %v70
    %100 = vmatprep.subr.mxu0 0.0
    %101 = vmatpush1.msra.mxu0 %v71
    %102 = vmatprep.subr.mxu0 0.0
    %103 = vmatpush1.msra.mxu0 %v72
    %104 = vmatprep.subr.mxu0 0.0
    %105 = vmatpush1.msra.mxu0 %v73
    %106 = vmatprep.subr.mxu0 0.0
    %107 = vmatpush1.msra.mxu0 %v74
    %108 = vmatprep.subr.mxu0 0.0
    %109 = vmatpush1.msra.mxu0 %v75
    %110 = vmatprep.subr.mxu0 0.0
    %111 = vmatpush1.msra.mxu0 %v76
    %112 = vmatprep.subr.mxu0 0.0
    %113 = vmatpush1.msra.mxu0 %v77
    %114 = vmatprep.subr.mxu0 0.0
    %115 = vmatpush1.msra.mxu0 %v78
    %116 = vmatprep.subr.mxu0 0.0
    %117 = vmatpush1.msra.mxu0 %v79
    %118 = vmatprep.subr.mxu0 0.0
    %119 = vmatpush1.msra.mxu0 %v80
    %120 = vmatprep.subr.mxu0 0.0
    %121 = vmatpush1.msra.mxu0 %v81
    %122 = vmatprep.subr.mxu0 0.0
    %123 = vmatpush1.msra.mxu0 %v82
    %124 = vmatprep.subr.mxu0 0.0
    %125 = vmatpush1.msra.mxu0 0.0
    %126 = vmatprep.subr.mxu0 0.0
    %127 = vmatpush1.msra.mxu0 0.0
    %128 = vmatprep.subr.mxu0 0.0
    %129 = vmatpush1.msra.mxu0 0.0
    %130 = vmatprep.subr.mxu0 0.0
    %131 = vmatpush1.msra.mxu0 0.0
    %132 = vmatprep.subr.mxu0 0.0
    %133 = vmatpush1.msra.mxu0 0.0
    %134 = vmatprep.subr.mxu0 0.0
    %135 = vmatpush1.msra.mxu0 0.0
    %136 = vmatprep.subr.mxu0 0.0
    %137 = vmatpush1.msra.mxu0 0.0
    %138 = vmatprep.subr.mxu0 0.0
    %139 = vmatpush1.msra.mxu0 0.0
    %140 = vmatprep.subr.mxu0 0.0
    %141 = vmatpush1.msra.mxu0 0.0
    %142 = vmatprep.subr.mxu0 0.0
    %143 = vmatpush1.msra.mxu0 0.0
    %144 = vmatprep.subr.mxu0 0.0
    %145 = vmatpush1.msra.mxu0 0.0
    %146 = vmatprep.subr.mxu0 0.0
    %147 = vmatpush1.msra.mxu0 0.0
    %148 = vmatprep.subr.mxu0 0.0
    %149 = vmatpush1.msra.mxu0 0.0
    %150 = vmatprep.subr.mxu0 0.0
    %151 = vmatpush1.msra.mxu0 0.0
    %152 = vmatprep.subr.mxu0 0.0
    %153 = vmatpush1.msra.mxu0 0.0
    %154 = vmatprep.subr.mxu0 0.0
    %155 = vmatpush1.msra.mxu0 0.0
    %156 = vmatprep.mubr.f32.mxu0 0.0
    %157 = vmatmul.mubr.f32.gmra.mrb[0].mxu0 %v66
    %v158 = vpop.f32.mrb[0].mxu0
    %v159 = vadd.f32 %v90, %v158
    %v160 = vpop.f32.mrb[0].mxu0
    %161 = vdwg.mxu0
    %v162 = vtanh.pop %v159
    %v163 = vsub.f32 0.0, %v162
    %v164 = vld [vmem:[#allocation8] sm:$0xff]
    %v165 = vld [vmem:[#allocation8 + $0x8] sm:$0xff]
    %v166 = vld [vmem:[#allocation8 + $0x10] sm:$0xff]
    %v167 = vld [vmem:[#allocation8 + $0x18] sm:$0xff]
    %v168 = vld [vmem:[#allocation8 + $0x20] sm:$0xff]
    %v169 = vld [vmem:[#allocation8 + $0x28] sm:$0xff]
    %v170 = vld [vmem:[#allocation8 + $0x30] sm:$0xff]
    %v171 = vld [vmem:[#allocation8 + $0x38] sm:$0xff]
    %v172 = vld [vmem:[#allocation8 + $0x40] sm:$0xff]
    %v173 = vld [vmem:[#allocation8 + $0x48] sm:$0xff]
    %v174 = vld [vmem:[#allocation8 + $0x50] sm:$0xff]
    %v175 = vld [vmem:[#allocation8 + $0x58] sm:$0xff]
    %v176 = vld [vmem:[#allocation8 + $0x60] sm:$0xff]
    %v177 = vld [vmem:[#allocation8 + $0x68] sm:$0xff]
    %v178 = vld [vmem:[#allocation8 + $0x70] sm:$0xff]
    %v179 = vld [vmem:[#allocation8 + $0x78] sm:$0xff]
    %180 = vmatprep.subr.mxu0 0.0
    %181 = vmatpush1.msra.mxu0 %v164
    %182 = vmatprep.subr.mxu0 0.0
    %183 = vmatpush1.msra.mxu0 %v165
    %184 = vmatprep.subr.mxu0 0.0
    %185 = vmatpush1.msra.mxu0 %v166
    %186 = vmatprep.subr.mxu0 0.0
    %187 = vmatpush1.msra.mxu0 %v167
    %188 = vmatprep.subr.mxu0 0.0
    %189 = vmatpush1.msra.mxu0 %v168
    %190 = vmatprep.subr.mxu0 0.0
    %191 = vmatpush1.msra.mxu0 %v169
    %192 = vmatprep.subr.mxu0 0.0
    %193 = vmatpush1.msra.mxu0 %v170
    %194 = vmatprep.subr.mxu0 0.0
    %195 = vmatpush1.msra.mxu0 %v171
    %196 = vmatprep.subr.mxu0 0.0
    %197 = vmatpush1.msra.mxu0 %v172
    %198 = vmatprep.subr.mxu0 0.0
    %199 = vmatpush1.msra.mxu0 %v173
    %200 = vmatprep.subr.mxu0 0.0
    %201 = vmatpush1.msra.mxu0 %v174
    %202 = vmatprep.subr.mxu0 0.0
    %203 = vmatpush1.msra.mxu0 %v175
    %204 = vmatprep.subr.mxu0 0.0
    %205 = vmatpush1.msra.mxu0 %v176
    %206 = vmatprep.subr.mxu0 0.0
    %207 = vmatpush1.msra.mxu0 %v177
    %208 = vmatprep.subr.mxu0 0.0
    %209 = vmatpush1.msra.mxu0 %v178
    %210 = vmatprep.subr.mxu0 0.0
    %211 = vmatpush1.msra.mxu0 %v179
    %212 = vmatprep.subr.mxu0 0.0
    %213 = vmatpush1.msra.mxu0 0.0
    %214 = vmatprep.subr.mxu0 0.0
    %215 = vmatpush1.msra.mxu0 0.0
    %216 = vmatprep.subr.mxu0 0.0
    %217 = vmatpush1.msra.mxu0 0.0
    %218 = vmatprep.subr.mxu0 0.0
    %219 = vmatpush1.msra.mxu0 0.0
    %220 = vmatprep.subr.mxu0 0.0
    %221 = vmatpush1.msra.mxu0 0.0
    %222 = vmatprep.subr.mxu0 0.0
    %223 = vmatpush1.msra.mxu0 0.0
    %224 = vmatprep.subr.mxu0 0.0
    %225 = vmatpush1.msra.mxu0 0.0
    %226 = vmatprep.subr.mxu0 0.0
    %227 = vmatpush1.msra.mxu0 0.0
    %228 = vmatprep.subr.mxu0 0.0
    %229 = vmatpush1.msra.mxu0 0.0
    %230 = vmatprep.subr.mxu0 0.0
    %231 = vmatpush1.msra.mxu0 0.0
    %232 = vmatprep.subr.mxu0 0.0
    %233 = vmatpush1.msra.mxu0 0.0
    %234 = vmatprep.subr.mxu0 0.0
    %235 = vmatpush1.msra.mxu0 0.0
    %236 = vmatprep.subr.mxu0 0.0
    %237 = vmatpush1.msra.mxu0 0.0
    %238 = vmatprep.subr.mxu0 0.0
    %239 = vmatpush1.msra.mxu0 0.0
    %240 = vmatprep.subr.mxu0 0.0
    %241 = vmatpush1.msra.mxu0 0.0
    %242 = vmatprep.subr.mxu0 0.0
    %243 = vmatpush1.msra.mxu0 0.0
    %244 = vmatprep.mubr.f32.mxu0 0.0
    %245 = vmatmul.mubr.f32.gmra.mrb[0].mxu0 %v163
    %v246 = vpop.f32.mrb[0].mxu0
    %v247 = vadd.f32 0.0, %v246
    %v248 = vpop.f32.mrb[0].mxu0
    %249 = vdwg.mxu0
    %v250 = vld [vmem:[%s5] sm:$0x1]
    %v252 = vlaneseq
    %v253 = vshrl.u32 %v252, 7
    %v254 = vsub.s32 0, %v253
    %v255 = vrot.slane %v250, %v254
    %v257 = vsub.f32 %v247, %v255
    %258 = vst [vmem:[#allocation9] sm:$0xff] %v257
    // Predicated region
    $region38: #{tpu_custom_call.1} parent=1 // pred_check
      _
    $region39: #{tpu_custom_call.1} parent=1 // pred_check_branch
      %260 = sbr.rel (0) target = $region41
    $region40: #{tpu_custom_call.1} parent=1 // pred_region
      %s262 = ssub.s32 128, 128
      %263 = vsyncadd [#allocation5], %s262
      %s265 = sshll.u32 [#allocation9], 4
      %s266 = int_to_ptr.vmem [resolvable:$true] %s265
      %268 = dma.vmem_to_hbm [thread:$0]  %s266, 128, %s6, [#allocation5]
    $region41: #{tpu_custom_call.1} parent=1 // pred_fallthru
      _
    // Predicated region
    $region42: #{tpu_custom_call.1} parent=1 // pred_check
      _
    $region43: #{tpu_custom_call.1} parent=1 // pred_check_branch
      %270 = sbr.rel (0) target = $region45
    $region44: #{tpu_custom_call.1} parent=1 // pred_region
      %271 = dma.done [#allocation5], 128
    $region45: #{tpu_custom_call.1} parent=1 // pred_fallthru
      _
    %272 = vsyncpa [#allocation4], 1
    %273 = vsyncpa [#allocation7], 1
    %274 = vsyncpa [#allocation5], 1

</llo_original>
